<compile_context>
chip_gen: v7x
topology: tpu7x:2x2x1
jax: 0.10.0
libtpu: 0.0.40
codegen_flags: <defaults>
</compile_context>

<pallas_src>
import jax
import jax.numpy as jnp
from jax.experimental import pallas as pl
from jax.experimental.pallas import tpu as pltpu


def _soft_argmax_dap_kernel(w_ref, delta_ref, x_ref, o_ref):
    """One (batch, pixel-tile) grid step.

    w_ref:     (D, D)  DAP weight, 1/temperature folded in (bf16, VMEM-resident)
    delta_ref: (D, 2)  flattened displacement table (f32, VMEM-resident)
    x_ref:     (D, T)  cost tile: D displacement channels x T pixels (lanes)
    o_ref:     (2, T)  flow output tile (lane-dense, f32)
    """
    x = x_ref[...]
    xb = x if x.dtype == jnp.bfloat16 else x.astype(jnp.bfloat16)          # (D, T) bf16

    # DAP 1x1 conv == per-pixel D x D projection -> one bf16 MXU matmul, f32 accumulate.
    logits = jnp.dot(w_ref[...], xb, preferred_element_type=jnp.float32)   # (D, T) f32

    # Numerically stable softmax over the displacement (sublane) axis, all f32,
    # without materializing the normalized scores.
    m = jnp.max(logits, axis=0, keepdims=True)                             # (1, T)
    e = jnp.exp(logits - m)                                                # (D, T)
    denom = jnp.sum(e, axis=0, keepdims=True)                              # (1, T)

    # Soft-argmax flow regression on the UNNORMALIZED exponentials (VPU mul + sublane
    # reduce), then a single normalization by the approximate reciprocal (EUP).
    dx = delta_ref[:, 0:1]                                                 # (D, 1)
    dy = delta_ref[:, 1:2]                                                 # (D, 1)
    fx = jnp.sum(e * dx, axis=0, keepdims=True)                            # (1, T)
    fy = jnp.sum(e * dy, axis=0, keepdims=True)                            # (1, T)
    inv = pl.reciprocal(denom, approx=True)                                # (1, T)

    o_ref[0:1, :] = (fx * inv).astype(o_ref.dtype)
    o_ref[1:2, :] = (fy * inv).astype(o_ref.dtype)


def _pick_pixel_tile(hw: int, batch: int, max_tile: int):
    """Pick a lane tile T (multiple of 128, or the full extent) and the tile count.

    Uses pl.cdiv so T never has to divide H*W (last tile may be partial), and keeps at
    least two pixel tiles when batch == 1 so both v7x TensorCores get work.
    """
    if hw <= max_tile:
        t = hw                                  # full extent: always a legal block dim
    else:
        t = max(128, (max_tile // 128) * 128)
    num_tiles = pl.cdiv(hw, t)
    if batch == 1 and num_tiles == 1 and hw >= 256:
        t = ((hw + 1) // 2 + 127) // 128 * 128  # split pixels across >= 2 grid steps
        num_tiles = pl.cdiv(hw, t)
    return t, num_tiles


def soft_argmax_flow_regression_with_dap(cost, dap_weight, radius,
                                         temperature=1.0, max_tile=8192):
    """Forward pass of SoftArgMaxFlowRegressionWithDap.

    cost:       (B, D, H, W) with D = (2*radius+1)**2   (f32 or bf16)
    dap_weight: (D, D) 1x1-conv weight, (out_channels, in_channels), no bias
    returns:    (B, 2, H, W) flow, float32
    """
    B, D, H, W = cost.shape
    assert D == (2 * radius + 1) ** 2, "channel dim must be (2r+1)^2"
    HW = H * W
    T, num_tiles = _pick_pixel_tile(HW, B, max_tile)

    # Fold temperature into the DAP weight (exact: conv has no bias), then cast to bf16
    # so the MXU runs its native bf16 path with f32 accumulation.
    w = (dap_weight.astype(jnp.float32) / jnp.float32(temperature)).astype(jnp.bfloat16)

    # Displacement table flattened in the same (i*(2r+1)+j) order as the channels.
    d1 = jnp.linspace(-radius, radius, 2 * radius + 1, dtype=jnp.float32)
    dxg, dyg = jnp.meshgrid(d1, d1, indexing="ij")
    delta = jnp.stack([dxg, dyg], axis=-1).reshape(D, 2)

    # Free reshape: native NCHW layout, pixels contiguous on the last axis.
    x = cost.reshape(B, D, HW)

    out = pl.pallas_call(
        _soft_argmax_dap_kernel,
        out_shape=jax.ShapeDtypeStruct((B, 2, HW), jnp.float32),
        grid_spec=pltpu.PrefetchScalarGridSpec(
            num_scalar_prefetch=0,
            grid=(B, num_tiles),
            in_specs=[
                # DAP weight and delta: same block every step -> VMEM-resident.
                pl.BlockSpec((D, D), lambda b, t: (0, 0)),
                pl.BlockSpec((D, 2), lambda b, t: (0, 0)),
                # Cost tile: squeeze the batch dim, D on sublanes, T pixels on lanes.
                pl.BlockSpec((None, D, T), lambda b, t: (b, 0, t)),
            ],
            out_specs=pl.BlockSpec((None, 2, T), lambda b, t: (b, 0, t)),
        ),
        compiler_params=pltpu.CompilerParams(
            dimension_semantics=("parallel", "parallel"),
            vmem_limit_bytes=48 * 1024 * 1024,
        ),
    )(w, delta, x)

    return out.reshape(B, 2, H, W)


if __name__ == "__main__":
    radius = 3
    temperature = 0.5
    D = (2 * radius + 1) ** 2          # 49
    B, H, W = 2, 16, 16

    key = jax.random.PRNGKey(0)
    k1, k2 = jax.random.split(key)
    cost = jax.random.normal(k1, (B, D, H, W), dtype=jnp.float32)
    dap_w = jax.random.normal(k2, (D, D), dtype=jnp.float32) * (1.0 / D ** 0.5)

    flow = soft_argmax_flow_regression_with_dap(cost, dap_w, radius, temperature)
    flow = jax.block_until_ready(flow)

    # Pure-JAX f32 reference (mirrors the PyTorch module).
    d1 = jnp.linspace(-radius, radius, 2 * radius + 1, dtype=jnp.float32)
    dxg, dyg = jnp.meshgrid(d1, d1, indexing="ij")
    delta_ref = jnp.stack([dxg, dyg], axis=-1).reshape(D, 2)
    logits = jnp.einsum("od,bdhw->bohw", dap_w, cost) / temperature
    score = jax.nn.softmax(logits, axis=1)
    ref = jnp.einsum("bdhw,dc->bchw", score, delta_ref)

    assert flow.shape == (B, 2, H, W)
    max_err = float(jnp.max(jnp.abs(flow - ref)))
    # Tolerance accounts for the bf16 MXU matmul (f32 accumulate) and approx reciprocal.
    assert jnp.allclose(flow, ref, atol=7.5e-2, rtol=5e-2), f"max abs err {max_err}"
    print("KERNEL_OK")
</pallas_src>

<mosaic_0001>
module attributes {stable_mosaic.version = 11 : i64} {
  func.func @_soft_argmax_dap_kernel(%arg0: i32, %arg1: i32, %arg2: memref<49x49xbf16, #tpu.memory_space<vmem>>, %arg3: memref<49x2xf32, #tpu.memory_space<vmem>>, %arg4: memref<1x49x256xf32, #tpu.memory_space<vmem>>, %arg5: memref<1x2x256xf32, #tpu.memory_space<vmem>>) attributes {dimension_semantics = [#tpu.dimension_semantics<parallel>, #tpu.dimension_semantics<parallel>], iteration_bounds = array<i64: 2, 1>, scalar_prefetch = 0 : i64, scratch_operands = 0 : i64, tpu.core_type = #tpu.core_type<tc>, window_params = [{pipeline_mode = #tpu.pipeline_mode<synchronous>, transform_indices = @transform_0, window_bounds = array<i64: 49, 49>}, {pipeline_mode = #tpu.pipeline_mode<synchronous>, transform_indices = @transform_1, window_bounds = array<i64: 49, 2>}, {transform_indices = @transform_2, window_bounds = array<i64: 1, 49, 256>}, {transform_indices = @transform_3, window_bounds = array<i64: 1, 2, 256>}]} {
    %c0 = arith.constant 0 : index
    %c0_0 = arith.constant 0 : index
    %c0_1 = arith.constant 0 : index
    %0 = vector.load %arg4[%c0, %c0_0, %c0_1] : memref<1x49x256xf32, #tpu.memory_space<vmem>>, vector<1x49x256xf32>
    %1 = vector.shape_cast %0 : vector<1x49x256xf32> to vector<49x256xf32>
    %2 = arith.truncf %1 : vector<49x256xf32> to vector<49x256xbf16>
    %c0_2 = arith.constant 0 : index
    %c0_3 = arith.constant 0 : index
    %3 = vector.load %arg2[%c0_2, %c0_3] : memref<49x49xbf16, #tpu.memory_space<vmem>>, vector<49x49xbf16>
    %cst = arith.constant dense<0.000000e+00> : vector<49x256xf32>
    %4 = tpu.matmul %3, %2, %cst {dimension_numbers = #tpu.dot_dimension_numbers<[1], [0], [0], [1], [0, 0, 1, 1], [], []>} : vector<49x49xbf16>, vector<49x256xbf16>, vector<49x256xf32> -> vector<49x256xf32>
    %cst_4 = arith.constant dense<0xFF800000> : vector<256xf32>
    %5 = vector.multi_reduction <maximumf>, %4, %cst_4 [0] : vector<49x256xf32> to vector<256xf32>
    %6 = vector.shape_cast %5 : vector<256xf32> to vector<1x256xf32>
    %7 = vector.broadcast %6 : vector<1x256xf32> to vector<49x256xf32>
    %8 = arith.subf %4, %7 : vector<49x256xf32>
    %9 = math.exp %8 : vector<49x256xf32>
    %cst_5 = arith.constant dense<0.000000e+00> : vector<256xf32>
    %10 = vector.multi_reduction <add>, %9, %cst_5 [0] : vector<49x256xf32> to vector<256xf32>
    %11 = vector.shape_cast %10 : vector<256xf32> to vector<1x256xf32>
    %c0_6 = arith.constant 0 : index
    %c0_7 = arith.constant 0 : index
    %12 = vector.load %arg3[%c0_6, %c0_7] : memref<49x2xf32, #tpu.memory_space<vmem>>, vector<49x1xf32>
    %c0_8 = arith.constant 0 : index
    %c1 = arith.constant 1 : index
    %13 = vector.load %arg3[%c0_8, %c1] : memref<49x2xf32, #tpu.memory_space<vmem>>, vector<49x1xf32>
    %14 = vector.broadcast %12 : vector<49x1xf32> to vector<49x256xf32>
    %15 = arith.mulf %9, %14 : vector<49x256xf32>
    %cst_9 = arith.constant dense<0.000000e+00> : vector<256xf32>
    %16 = vector.multi_reduction <add>, %15, %cst_9 [0] : vector<49x256xf32> to vector<256xf32>
    %17 = vector.shape_cast %16 : vector<256xf32> to vector<1x256xf32>
    %18 = vector.broadcast %13 : vector<49x1xf32> to vector<49x256xf32>
    %19 = arith.mulf %9, %18 : vector<49x256xf32>
    %cst_10 = arith.constant dense<0.000000e+00> : vector<256xf32>
    %20 = vector.multi_reduction <add>, %19, %cst_10 [0] : vector<49x256xf32> to vector<256xf32>
    %21 = vector.shape_cast %20 : vector<256xf32> to vector<1x256xf32>
    %22 = tpu.reciprocal %11 {approx = true} : vector<1x256xf32> -> vector<1x256xf32>
    %23 = arith.mulf %17, %22 : vector<1x256xf32>
    %c0_11 = arith.constant 0 : index
    %c0_12 = arith.constant 0 : index
    %c0_13 = arith.constant 0 : index
    %24 = vector.load %arg5[%c0_11, %c0_12, %c0_13] : memref<1x2x256xf32, #tpu.memory_space<vmem>>, vector<1x1x256xf32>
    %25 = vector.shape_cast %24 : vector<1x1x256xf32> to vector<1x256xf32>
    %26 = vector.shape_cast %23 : vector<1x256xf32> to vector<1x1x256xf32>
    tpu.vector_store %arg5[%c0_11, %c0_12, %c0_13], %26 {strides = array<i32>} : memref<1x2x256xf32, #tpu.memory_space<vmem>>, vector<1x1x256xf32>,
    %27 = arith.mulf %21, %22 : vector<1x256xf32>
    %c0_14 = arith.constant 0 : index
    %c1_15 = arith.constant 1 : index
    %c0_16 = arith.constant 0 : index
    %28 = vector.load %arg5[%c0_14, %c1_15, %c0_16] : memref<1x2x256xf32, #tpu.memory_space<vmem>>, vector<1x1x256xf32>
    %29 = vector.shape_cast %28 : vector<1x1x256xf32> to vector<1x256xf32>
    %30 = vector.shape_cast %27 : vector<1x256xf32> to vector<1x1x256xf32>
    tpu.vector_store %arg5[%c0_14, %c1_15, %c0_16], %30 {strides = array<i32>} : memref<1x2x256xf32, #tpu.memory_space<vmem>>, vector<1x1x256xf32>,
    return
  }
  func.func @transform_0(%arg0: i32, %arg1: i32) -> (i32, i32) {
    %c0_i32 = arith.constant 0 : i32
    %c0_i32_0 = arith.constant 0 : i32
    %c0_i32_1 = arith.constant 0 : i32
    return %c0_i32, %c0_i32_0 : i32, i32
  }
  func.func @transform_1(%arg0: i32, %arg1: i32) -> (i32, i32) {
    %c0_i32 = arith.constant 0 : i32
    %c0_i32_0 = arith.constant 0 : i32
    %c0_i32_1 = arith.constant 0 : i32
    return %c0_i32, %c0_i32_0 : i32, i32
  }
  func.func @transform_2(%arg0: i32, %arg1: i32) -> (i32, i32, i32) {
    %c0_i32 = arith.constant 0 : i32
    %c0_i32_0 = arith.constant 0 : i32
    return %arg0, %c0_i32, %arg1 : i32, i32, i32
  }
  func.func @transform_3(%arg0: i32, %arg1: i32) -> (i32, i32, i32) {
    %c0_i32 = arith.constant 0 : i32
    %c0_i32_0 = arith.constant 0 : i32
    return %arg0, %c0_i32, %arg1 : i32, i32, i32
  }
}

</mosaic_0001>

<llo_original>
// kernel: tpu_custom_call.1
$region0: #{tpu_custom_call.1}
  #allocation0 [shape = 'u32[]', space=smem, size = 0x4, offset = 0x4, fixed_abs, tag = 'smem constant byte address 0x4 - core index']
  #allocation1 [shape = 'u32[144,128]{1,0:T(1,128)}', space=vmem, size = 0x12000, scoped, tag = 'internal scratch']
  %s0 = inlined_call_operand.vmem [shape: bf16[49,49], index: 0, kind: input, shape index: {}]
  %s1 = inlined_call_operand.vmem [shape: f32[49,2], index: 1, kind: input, shape index: {}]
  %s2 = inlined_call_operand.vmem [shape: f32[2,49,256], index: 2, kind: input, shape index: {}]
  %s3 = inlined_call_operand.hbm [shape: f32[2,2,256], index: 3, kind: output, shape index: {}]
  %s4 = sld [smem:[#allocation0]]
  $region45: #{tpu_custom_call.1} parent=0
    _
  %s6 = ssub.s32 1, %s4
  %s7 = scalar_select 0, %s6, %s4
  $region1: #{tpu_custom_call.1} parent=0
    #allocation2 [shape = 'u8[4096]{0}', space=vmem, size = 0x1000, scoped, tag = 'output window, operand 0']
    #allocation3 [shape = 's32[2]{0}', space=sflag, size = 0x8, scoped, tag = 'scoped memory for tpu_custom_call.1']
    %8 = vsyncpa [#allocation3], 0
    %s9 = scalar_lea.sflag [#allocation3], 1
    %10 = vsyncpa %s9, 0
    loop: start=0, step=1, limit=4
    $region2: #{tpu_custom_call.1} parent=1 // loop_pre_header
      _
    $region3: #{tpu_custom_call.1} parent=1 // loop_header
      %s12 = sphi 0, %s16
      %p13 = scmp.ge.s32.totalorder %s12, 4
      %s19 = sphi 0, %s31
      %s20 = sphi 0, %s27
      %s21 = sphi 0, %s19
      %s22 = sphi 0, %s20
      %s23 = sphi 0, %s21
      %s24 = sphi 0, %s22
      %s32 = sphi 0, %s32
      %s34 = sphi 0, %s32
      %s35 = sphi 0, %s34
      %s49 = sphi 0, %s35
      %s53 = sphi 0, %s53
      %s55 = sphi 0, %s53
      %s56 = sphi 0, %s55
      %s70 = sphi 0, %s56
      %s78 = sphi 0, %s80
      %s81 = sphi 0, %s78
      %s82 = sphi 0, %s81
      %s98 = sphi 0, %s82
      %s106 = sphi 0, %s108
      %s109 = sphi 0, %s106
      %s110 = sphi 0, %s109
      %s126 = sphi 0, %s110
    $region4: #{tpu_custom_call.1} parent=1 // loop_header_branch
      %15 = sbr.rel (%p13) target = $region8
    $region5: #{tpu_custom_call.1} parent=1 // loop_body
      %s17 = ssub.s32 %s12, 1
      %s18 = ssub.s32 %s12, 2
      %s25 = sadd.s32 1, %s20
      %p26 = scmp.ge.s32.totalorder %s25, 1
      %s27 = scalar_select %p26, 0, %s25
      %s28 = sadd.s32 1, %s19
      %s29 = scalar_select %p26, %s28, %s19
      %p30 = scmp.ge.s32.totalorder %s29, 2
      %s31 = scalar_select %p30, 0, %s29
      %s33 = sadd.s32 %s32, 1
      %p36 = scmp.eq.s32.totalorder %s12, 1
      %p37 = scmp.ne.s32.totalorder %s32, %s34
      %p38 = scmp.eq.s32.totalorder %s12, 0
      %p39 = por %p37, %p38
      %p40 = scmp.ne.s32.totalorder %s32, %s34
      %p41 = scmp.eq.s32.totalorder %s17, 1
      %p42 = por %p40, %p41
      %p43 = scmp.ne.s32.totalorder %s34, %s35
      %p44 = scmp.eq.s32.totalorder %s17, 0
      %p45 = por %p43, %p44
      %p46 = scmp.ne.s32.totalorder %s34, %s35
      %p47 = scmp.eq.s32.totalorder %s18, 1
      %p48 = por %p46, %p47
      %p50 = scmp.ne.s32.totalorder %s35, %s49
      %p51 = scmp.eq.s32.totalorder %s18, 0
      %p52 = por %p50, %p51
      %s54 = sadd.s32 %s53, 1
      %p57 = scmp.eq.s32.totalorder %s12, 1
      %p58 = scmp.ne.s32.totalorder %s53, %s55
      %p59 = scmp.eq.s32.totalorder %s12, 0
      %p60 = por %p58, %p59
      %p61 = scmp.ne.s32.totalorder %s53, %s55
      %p62 = scmp.eq.s32.totalorder %s17, 1
      %p63 = por %p61, %p62
      %p64 = scmp.ne.s32.totalorder %s55, %s56
      %p65 = scmp.eq.s32.totalorder %s17, 0
      %p66 = por %p64, %p65
      %p67 = scmp.ne.s32.totalorder %s55, %s56
      %p68 = scmp.eq.s32.totalorder %s18, 1
      %p69 = por %p67, %p68
      %p71 = scmp.ne.s32.totalorder %s56, %s70
      %p72 = scmp.eq.s32.totalorder %s18, 0
      %p73 = por %p71, %p72
      %s74 = ssub.s32 %s19, %s31
      %s75 = ssub.s32 %s20, %s27
      %s76 = sor.u32 %s74, %s75
      %p77 = scmp.eq.s32.totalorder %s76, 0
      %s79 = sadd.s32 %s78, 1
      %s80 = scalar_select %p77, %s78, %s79
      %p83 = pneg %p77
      %p84 = scmp.eq.s32.totalorder %s12, 1
      %p85 = por %p83, %p84
      %p86 = scmp.ne.s32.totalorder %s78, %s81
      %p87 = scmp.eq.s32.totalorder %s12, 0
      %p88 = por %p86, %p87
      %p89 = scmp.ne.s32.totalorder %s78, %s81
      %p90 = scmp.eq.s32.totalorder %s17, 1
      %p91 = por %p89, %p90
      %p92 = scmp.ne.s32.totalorder %s81, %s82
      %p93 = scmp.eq.s32.totalorder %s17, 0
      %p94 = por %p92, %p93
      %p95 = scmp.ne.s32.totalorder %s81, %s82
      %p96 = scmp.eq.s32.totalorder %s18, 1
      %p97 = por %p95, %p96
      %p99 = scmp.ne.s32.totalorder %s82, %s98
      %p100 = scmp.eq.s32.totalorder %s18, 0
      %p101 = por %p99, %p100
      %s102 = ssub.s32 %s19, %s31
      %s103 = ssub.s32 %s20, %s27
      %s104 = sor.u32 %s102, %s103
      %p105 = scmp.eq.s32.totalorder %s104, 0
      %s107 = sadd.s32 %s106, 1
      %s108 = scalar_select %p105, %s106, %s107
      %p111 = pneg %p105
      %p112 = scmp.eq.s32.totalorder %s12, 1
      %p113 = por %p111, %p112
      %p114 = scmp.ne.s32.totalorder %s106, %s109
      %p115 = scmp.eq.s32.totalorder %s12, 0
      %p116 = por %p114, %p115
      %p117 = scmp.ne.s32.totalorder %s106, %s109
      %p118 = scmp.eq.s32.totalorder %s17, 1
      %p119 = por %p117, %p118
      %p120 = scmp.ne.s32.totalorder %s109, %s110
      %p121 = scmp.eq.s32.totalorder %s17, 0
      %p122 = por %p120, %p121
      %p123 = scmp.ne.s32.totalorder %s109, %s110
      %p124 = scmp.eq.s32.totalorder %s18, 1
      %p125 = por %p123, %p124
      %p127 = scmp.ne.s32.totalorder %s110, %s126
      %p128 = scmp.eq.s32.totalorder %s18, 0
      %p129 = por %p127, %p128
      %p130 = scmp.le.s32.totalorder 1, %s12
      %p131 = scmp.lt.s32.totalorder %s12, 3
      %p132 = pnand %p130, %p131
      %p133 = pneg %p132
      // Predicated region
      $region9: #{tpu_custom_call.1} parent=5 // pred_check
        _
      $region10: #{tpu_custom_call.1} parent=5 // pred_check_branch
        %135 = sbr.rel (%p132) target = $region12
      $region11: #{tpu_custom_call.1} parent=5 // pred_region
        %s136 = ssub.s32 %s12, 1
        // Predicated region
        $region13: #{tpu_custom_call.1} parent=11 // pred_check
          %p137 = pneg %p45
        $region14: #{tpu_custom_call.1} parent=11 // pred_check_branch
          %139 = sbr.rel (%p137) target = $region16
        $region15: #{tpu_custom_call.1} parent=11 // pred_region
          _
        $region16: #{tpu_custom_call.1} parent=11 // pred_fallthru
          _
        // Predicated region
        $region17: #{tpu_custom_call.1} parent=11 // pred_check
          %p140 = pneg %p66
        $region18: #{tpu_custom_call.1} parent=11 // pred_check_branch
          %142 = sbr.rel (%p140) target = $region20
        $region19: #{tpu_custom_call.1} parent=11 // pred_region
          _
        $region20: #{tpu_custom_call.1} parent=11 // pred_fallthru
          _
      $region12: #{tpu_custom_call.1} parent=5 // pred_fallthru
        _
      %p143 = scmp.lt.s32.totalorder %s12, 2
      // Predicated region
      $region21: #{tpu_custom_call.1} parent=5 // pred_check
        %p144 = pneg %p143
      $region22: #{tpu_custom_call.1} parent=5 // pred_check_branch
        %146 = sbr.rel (%p144) target = $region24
      $region23: #{tpu_custom_call.1} parent=5 // pred_region
        // Predicated region
        $region25: #{tpu_custom_call.1} parent=23 // pred_check
          %p147 = pneg %p88
        $region26: #{tpu_custom_call.1} parent=23 // pred_check_branch
          %149 = sbr.rel (%p147) target = $region28
        $region27: #{tpu_custom_call.1} parent=23 // pred_region
          %s150 = smul.u32 2, %s20
          %p151 = scmp.lt.s32.totalorder %s19, 1
          %s152 = scalar_select %p151, %s19, 1
          %p153 = scmp.lt.s32.totalorder %s150, 1
          %s154 = scalar_select %p153, %s150, 1
          %s155 = smul.addr %s152, 14
          %s156 = sadd.s32 %s154, %s155
          %s157 = smul.addr %s156, 8
          %s158 = scalar_lea.vmem %s2, %s157
          %s159 = smul.u32 2, %s20
        $region28: #{tpu_custom_call.1} parent=23 // pred_fallthru
          _
      $region24: #{tpu_custom_call.1} parent=5 // pred_fallthru
        _
      %p160 = scmp.le.s32.totalorder 1, %s12
      %p161 = scmp.lt.s32.totalorder %s12, 3
      %p162 = pnand %p160, %p161
      %p163 = pneg %p162
      // Predicated region
      $region29: #{tpu_custom_call.1} parent=5 // pred_check
        _
      $region30: #{tpu_custom_call.1} parent=5 // pred_check_branch
        %165 = sbr.rel (%p162) target = $region32
      $region31: #{tpu_custom_call.1} parent=5 // pred_region
        %s166 = ssub.s32 %s12, 1
        %p167 = pneg %p45
        %p168 = pneg %p42
        %p169 = pneg %p66
        %p170 = pneg %p63
        %s171 = smul.u32 2, %s22
        %p172 = scmp.lt.s32.totalorder %s21, 1
        %s173 = scalar_select %p172, %s21, 1
        %p174 = scmp.lt.s32.totalorder %s171, 1
        %s175 = scalar_select %p174, %s171, 1
        %s176 = smul.addr %s173, 14
        %s177 = sadd.s32 %s175, %s176
        %s178 = smul.addr %s177, 8
        %s179 = scalar_lea.vmem %s2, %s178
        %p180 = pneg %p94
        %p181 = pneg %p91
        %p182 = pneg %p122
        %p183 = pneg %p119
        %s184 = sand.u32 %s109, 1
        %s185 = scalar_lea.sflag [#allocation3], %s184
        %s186 = sand.u32 %s109, 1
        %s187 = smul.addr %s186, 4
        %s188 = scalar_lea.vmem [#allocation2], %s187
        %s189 = smul.u32 2, %s22
        %p190 = scmp.lt.s32.totalorder %s21, 1
        %s191 = scalar_select %p190, %s21, 1
        %p192 = scmp.lt.s32.totalorder %s189, 1
        %s193 = scalar_select %p192, %s189, 1
        %s194 = smul.addr %s191, 14
        %s195 = sadd.s32 %s193, %s194
        %s196 = smul.addr %s195, 8
        %s197 = scalar_lea.vmem %s2, %s196
        %s198 = smul.u32 2, %s22
        %s199 = smul.u32 2, %s22
        %v201 = vld [vmem:[%s197] sm:$0xff]
        %v202 = vld [vmem:[%s197 + $0x8] sm:$0xff]
        %v203 = vld [vmem:[%s197 + $0x10] sm:$0xff]
        %v204 = vld [vmem:[%s197 + $0x18] sm:$0xff]
        %v205 = vld [vmem:[%s197 + $0x20] sm:$0xff]
        %v206 = vld [vmem:[%s197 + $0x28] sm:$0xff]
        %v207 = vld [vmem:[%s197 + $0x30] sm:$0xff]
        %v208 = vld [vmem:[%s197 + $0x38] sm:$0xff]
        %v209 = vld [vmem:[%s197 + $0x40] sm:$0xff]
        %v210 = vld [vmem:[%s197 + $0x48] sm:$0xff]
        %v211 = vld [vmem:[%s197 + $0x50] sm:$0xff]
        %v212 = vld [vmem:[%s197 + $0x58] sm:$0xff]
        %v213 = vld [vmem:[%s197 + $0x60] sm:$0x1]
        %v214 = vld [vmem:[%s197 + $0x68] sm:$0x1]
        %v215 = vpack.c.bf16 %v203, %v201
        %v216 = vpack.c.bf16 %v204, %v202
        %v217 = vpack.c.bf16 %v207, %v205
        %v218 = vpack.c.bf16 %v208, %v206
        %v219 = vpack.c.bf16 %v211, %v209
        %v220 = vpack.c.bf16 %v212, %v210
        %v221 = vpack.c.bf16 %v213, %v213
        %v222 = vpack.c.bf16 %v214, %v214
        %v223 = vld [vmem:[%s0] sm:$0xf]
        %v224 = vld [vmem:[%s0 + $0x4] sm:$0xf]
        %v225 = vld [vmem:[%s0 + $0x8] sm:$0xf]
        %v226 = vld [vmem:[%s0 + $0xc] sm:$0xf]
        %v227 = vld [vmem:[%s0 + $0x10] sm:$0xf]
        %v228 = vld [vmem:[%s0 + $0x14] sm:$0xf]
        %v229 = vld [vmem:[%s0 + $0x18] sm:$0x1]
        %v237 = vunpack.c.l.b16 %v223
        %v238 = vunpack.c.l.b16 %v224
        %v239 = vunpack.c.l.b16 %v225
        %v240 = vunpack.c.l.b16 %v226
        %v241 = vunpack.c.l.b16 %v227
        %v242 = vunpack.c.l.b16 %v228
        %v243 = vunpack.c.l.b16 %v229
        %v244 = vpack.c.b16 %v238, %v237
        %v245 = vpack.c.b16 %v240, %v239
        %v246 = vpack.c.b16 %v242, %v241
        %v247 = vpack.c.b16 %v243, %v243
        %vm248 = vcmask 400384
        %v250 = vsel %vm248, %v244, 0
        %v253 = vsel %vm248, %v245, 0
        %v256 = vsel %vm248, %v246, 0
        %v259 = vsel %vm248, %v247, 0
        %vm261 = vcmask 1040384
        %v262 = vsel 0, 4294967295, 65535
        %v263 = vsel %vm261, %v262, 0
        %v265 = vand.u32 %v221, %v263
        %v268 = vand.u32 %v222, %v263
        %270 = vmatprep.subr.bf16.mxu0 %v216
        %271 = vmatpush1.bf16.msra.mxu0 %v215
        %272 = vmatprep.subr.bf16.mxu0 %v218
        %273 = vmatpush1.bf16.msra.mxu0 %v217
        %274 = vmatprep.subr.bf16.mxu0 %v220
        %275 = vmatpush1.bf16.msra.mxu0 %v219
        %276 = vmatprep.subr.bf16.mxu0 %v268
        %277 = vmatpush1.bf16.msra.mxu0 %v265
        %278 = vmatprep.subr.bf16.mxu0 0
        %279 = vmatpush1.bf16.msra.mxu0 0
        %280 = vmatprep.subr.bf16.mxu0 0
        %281 = vmatpush1.bf16.msra.mxu0 0
        %282 = vmatprep.subr.bf16.mxu0 0
        %283 = vmatpush1.bf16.msra.mxu0 0
        %284 = vmatprep.subr.bf16.mxu0 0
        %285 = vmatpush1.bf16.msra.mxu0 0
        %286 = vmatprep.subr.bf16.mxu0 0
        %287 = vmatpush1.bf16.msra.mxu0 0
        %288 = vmatprep.subr.bf16.mxu0 0
        %289 = vmatpush1.bf16.msra.mxu0 0
        %290 = vmatprep.subr.bf16.mxu0 0
        %291 = vmatpush1.bf16.msra.mxu0 0
        %292 = vmatprep.subr.bf16.mxu0 0
        %293 = vmatpush1.bf16.msra.mxu0 0
        %294 = vmatprep.subr.bf16.mxu0 0
        %295 = vmatpush1.bf16.msra.mxu0 0
        %296 = vmatprep.subr.bf16.mxu0 0
        %297 = vmatpush1.bf16.msra.mxu0 0
        %298 = vmatprep.subr.bf16.mxu0 0
        %299 = vmatpush1.bf16.msra.mxu0 0
        %300 = vmatprep.subr.bf16.mxu0 0
        %301 = vmatpush1.bf16.msra.mxu0 0
        %302 = vmatprep.mubr.bf16.mxu0 0
        %303 = vmatmul.mubr.bf16.gmra.mrb[0].mxu0 %v250
        %v304 = vpop.f32.mrb[0].mxu0
        %v305 = vadd.f32 0.0, %v304
        %v306 = vpop.f32.mrb[0].mxu0
        %v307 = vadd.f32 0.0, %v306
        %v308 = vpop.f32.mrb[0].mxu0
        %v309 = vadd.f32 0.0, %v308
        %v310 = vpop.f32.mrb[0].mxu0
        %v311 = vadd.f32 0.0, %v310
        %312 = vmatprep.mubr.bf16.mxu0 0
        %313 = vmatmul.mubr.bf16.gmra.mrb[0].mxu0 %v253
        %v314 = vpop.f32.mrb[0].mxu0
        %v315 = vadd.f32 0.0, %v314
        %v316 = vpop.f32.mrb[0].mxu0
        %v317 = vadd.f32 0.0, %v316
        %v318 = vpop.f32.mrb[0].mxu0
        %v319 = vadd.f32 0.0, %v318
        %v320 = vpop.f32.mrb[0].mxu0
        %v321 = vadd.f32 0.0, %v320
        %322 = vmatprep.mubr.bf16.mxu0 0
        %323 = vmatmul.mubr.bf16.gmra.mrb[0].mxu0 %v256
        %v324 = vpop.f32.mrb[0].mxu0
        %v325 = vadd.f32 0.0, %v324
        %v326 = vpop.f32.mrb[0].mxu0
        %v327 = vadd.f32 0.0, %v326
        %v328 = vpop.f32.mrb[0].mxu0
        %v329 = vadd.f32 0.0, %v328
        %v330 = vpop.f32.mrb[0].mxu0
        %v331 = vadd.f32 0.0, %v330
        %332 = vmatprep.mubr.bf16.mxu0 0
        %333 = vmatmul.mubr.bf16.gmra.mrb[0].mxu0 %v259
        %v334 = vpop.f32.mrb[0].mxu0
        %v335 = vadd.f32 0.0, %v334
        %v336 = vpop.f32.mrb[0].mxu0
        %v337 = vadd.f32 0.0, %v336
        %v338 = vpop.f32.mrb[0].mxu0
        %v339 = vpop.f32.mrb[0].mxu0
        %340 = vdwg.mxu0
        %v341 = vmax.f32 %v305, %v315
        %v342 = vmax.f32 %v309, %v319
        %v343 = vmax.f32 %v341, %v325
        %v344 = vmax.f32 %v342, %v329
        %v345 = vsel %vm261, %v335, -inf
        %v346 = vmax.f32 %v343, %v345
        %v347 = vmax.f32 %v346, %v344
        %v348 = vrot.slane %v347, 4
        %v349 = vmax.f32 %v347, %v348
        %v350 = vrot.slane %v349, 2
        %v351 = vmax.f32 %v349, %v350
        %v352 = vrot.slane %v351, 1
        %v353 = vmax.f32 %v351, %v352
        %v354 = vmax.f32 %v307, %v317
        %v355 = vmax.f32 %v311, %v321
        %v356 = vmax.f32 %v354, %v327
        %v357 = vmax.f32 %v355, %v331
        %v358 = vsel %vm261, %v337, -inf
        %v359 = vmax.f32 %v356, %v358
        %v360 = vmax.f32 %v359, %v357
        %v361 = vrot.slane %v360, 4
        %v362 = vmax.f32 %v360, %v361
        %v363 = vrot.slane %v362, 2
        %v364 = vmax.f32 %v362, %v363
        %v365 = vrot.slane %v364, 1
        %v366 = vmax.f32 %v364, %v365
        %v367 = vsub.f32 %v305, %v353
        %v368 = vsub.f32 %v307, %v366
        %v369 = vsub.f32 %v309, %v353
        %v370 = vsub.f32 %v311, %v366
        %v371 = vsub.f32 %v315, %v353
        %v372 = vsub.f32 %v317, %v366
        %v373 = vsub.f32 %v319, %v353
        %v374 = vsub.f32 %v321, %v366
        %v375 = vsub.f32 %v325, %v353
        %v376 = vsub.f32 %v327, %v366
        %v377 = vsub.f32 %v329, %v353
        %v378 = vsub.f32 %v331, %v366
        %v379 = vsub.f32 %v335, %v353
        %v380 = vsub.f32 %v337, %v366
        %v381 = vmul.f32 %v367, 1.442695
        %v382 = vpow.pop %v381
        %v383 = vmul.f32 %v368, 1.442695
        %v384 = vpow.pop %v383
        %v385 = vmul.f32 %v369, 1.442695
        %v386 = vpow.pop %v385
        %v387 = vmul.f32 %v370, 1.442695
        %v388 = vpow.pop %v387
        %v389 = vmul.f32 %v371, 1.442695
        %v390 = vpow.pop %v389
        %v391 = vmul.f32 %v372, 1.442695
        %v392 = vpow.pop %v391
        %v393 = vmul.f32 %v373, 1.442695
        %v394 = vpow.pop %v393
        %v395 = vmul.f32 %v374, 1.442695
        %v396 = vpow.pop %v395
        %v397 = vmul.f32 %v375, 1.442695
        %v398 = vpow.pop %v397
        %v399 = vmul.f32 %v376, 1.442695
        %v400 = vpow.pop %v399
        %v401 = vmul.f32 %v377, 1.442695
        %v402 = vpow.pop %v401
        %v403 = vmul.f32 %v378, 1.442695
        %v404 = vpow.pop %v403
        %v405 = vmul.f32 %v379, 1.442695
        %v406 = vpow.pop %v405
        %v407 = vmul.f32 %v380, 1.442695
        %v408 = vpow.pop %v407
        %v409 = vadd.f32 %v382, %v386
        %v410 = vadd.f32 %v409, %v390
        %v411 = vadd.f32 %v410, %v394
        %v412 = vadd.f32 %v411, %v398
        %v413 = vadd.f32 %v412, %v402
        %v414 = vsel %vm261, %v406, 0.0
        %v415 = vadd.f32 %v413, %v414
        %v416 = vrot.slane %v415, 4
        %v417 = vadd.f32 %v415, %v416
        %v418 = vrot.slane %v417, 2
        %v419 = vadd.f32 %v417, %v418
        %v420 = vrot.slane %v419, 1
        %v421 = vadd.f32 %v419, %v420
        %v422 = vadd.f32 %v384, %v388
        %v423 = vadd.f32 %v422, %v392
        %v424 = vadd.f32 %v423, %v396
        %v425 = vadd.f32 %v424, %v400
        %v426 = vadd.f32 %v425, %v404
        %v427 = vsel %vm261, %v408, 0.0
        %v428 = vadd.f32 %v426, %v427
        %v429 = vrot.slane %v428, 4
        %v430 = vadd.f32 %v428, %v429
        %v431 = vrot.slane %v430, 2
        %v432 = vadd.f32 %v430, %v431
        %v433 = vrot.slane %v432, 1
        %v434 = vadd.f32 %v432, %v433
        %v435 = vld [vmem:[%s1] sm:$0xff]
        %v436 = vld [vmem:[%s1 + $0x8] sm:$0xff]
        %v437 = vld [vmem:[%s1 + $0x10] sm:$0xff]
        %v438 = vld [vmem:[%s1 + $0x18] sm:$0xff]
        %v439 = vld [vmem:[%s1 + $0x20] sm:$0xff]
        %v440 = vld [vmem:[%s1 + $0x28] sm:$0xff]
        %v441 = vld [vmem:[%s1 + $0x30] sm:$0x1]
        %443 = vset.pattern.permute.xlu0 0
        %444 = vperm.xlu0 %443, %v435
        %v445 = vpop.permute.xlu0 %444
        %448 = vset.pattern.permute.xlu0 0
        %449 = vperm.xlu0 %448, %v436
        %v450 = vpop.permute.xlu0 %449
        %453 = vset.pattern.permute.xlu0 0
        %454 = vperm.xlu0 %453, %v437
        %v455 = vpop.permute.xlu0 %454
        %458 = vset.pattern.permute.xlu0 0
        %459 = vperm.xlu0 %458, %v438
        %v460 = vpop.permute.xlu0 %459
        %463 = vset.pattern.permute.xlu0 0
        %464 = vperm.xlu0 %463, %v439
        %v465 = vpop.permute.xlu0 %464
        %468 = vset.pattern.permute.xlu0 0
        %469 = vperm.xlu0 %468, %v440
        %v470 = vpop.permute.xlu0 %469
        %473 = vset.pattern.permute.xlu0 0
        %474 = vperm.xlu0 %473, %v441
        %v475 = vpop.permute.xlu0 %474
        %v477 = vmul.f32 %v382, %v445
        %v478 = vmul.f32 %v384, %v445
        %v479 = vmul.f32 %v386, %v450
        %v480 = vmul.f32 %v388, %v450
        %v481 = vmul.f32 %v390, %v455
        %v482 = vmul.f32 %v392, %v455
        %v483 = vmul.f32 %v394, %v460
        %v484 = vmul.f32 %v396, %v460
        %v485 = vmul.f32 %v398, %v465
        %v486 = vmul.f32 %v400, %v465
        %v487 = vmul.f32 %v402, %v470
        %v488 = vmul.f32 %v404, %v470
        %v489 = vmul.f32 %v406, %v475
        %v490 = vmul.f32 %v408, %v475
        %v491 = vadd.f32 %v477, %v479
        %v492 = vadd.f32 %v491, %v481
        %v493 = vadd.f32 %v492, %v483
        %v494 = vadd.f32 %v493, %v485
        %v495 = vadd.f32 %v494, %v487
        %v496 = vsel %vm261, %v489, 0.0
        %v497 = vadd.f32 %v495, %v496
        %v498 = vrot.slane %v497, 4
        %v499 = vadd.f32 %v497, %v498
        %v500 = vrot.slane %v499, 2
        %v501 = vadd.f32 %v499, %v500
        %v502 = vrot.slane %v501, 1
        %v503 = vadd.f32 %v501, %v502
        %v504 = vadd.f32 %v478, %v480
        %v505 = vadd.f32 %v504, %v482
        %v506 = vadd.f32 %v505, %v484
        %v507 = vadd.f32 %v506, %v486
        %v508 = vadd.f32 %v507, %v488
        %v509 = vsel %vm261, %v490, 0.0
        %v510 = vadd.f32 %v508, %v509
        %v511 = vrot.slane %v510, 4
        %v512 = vadd.f32 %v510, %v511
        %v513 = vrot.slane %v512, 2
        %v514 = vadd.f32 %v512, %v513
        %v515 = vrot.slane %v514, 1
        %v516 = vadd.f32 %v514, %v515
        %517 = vset.pattern.permute.xlu0 1
        %518 = vperm.xlu0 %517, %v435
        %v519 = vpop.permute.xlu0 %518
        %521 = vset.pattern.permute.xlu0 1
        %522 = vperm.xlu0 %521, %v436
        %v523 = vpop.permute.xlu0 %522
        %525 = vset.pattern.permute.xlu0 1
        %526 = vperm.xlu0 %525, %v437
        %v527 = vpop.permute.xlu0 %526
        %529 = vset.pattern.permute.xlu0 1
        %530 = vperm.xlu0 %529, %v438
        %v531 = vpop.permute.xlu0 %530
        %533 = vset.pattern.permute.xlu0 1
        %534 = vperm.xlu0 %533, %v439
        %v535 = vpop.permute.xlu0 %534
        %537 = vset.pattern.permute.xlu0 1
        %538 = vperm.xlu0 %537, %v440
        %v539 = vpop.permute.xlu0 %538
        %541 = vset.pattern.permute.xlu0 1
        %542 = vperm.xlu0 %541, %v441
        %v543 = vpop.permute.xlu0 %542
        %v545 = vmul.f32 %v382, %v519
        %v546 = vmul.f32 %v384, %v519
        %v547 = vmul.f32 %v386, %v523
        %v548 = vmul.f32 %v388, %v523
        %v549 = vmul.f32 %v390, %v527
        %v550 = vmul.f32 %v392, %v527
        %v551 = vmul.f32 %v394, %v531
        %v552 = vmul.f32 %v396, %v531
        %v553 = vmul.f32 %v398, %v535
        %v554 = vmul.f32 %v400, %v535
        %v555 = vmul.f32 %v402, %v539
        %v556 = vmul.f32 %v404, %v539
        %v557 = vmul.f32 %v406, %v543
        %v558 = vmul.f32 %v408, %v543
        %v559 = vadd.f32 %v545, %v547
        %v560 = vadd.f32 %v559, %v549
        %v561 = vadd.f32 %v560, %v551
        %v562 = vadd.f32 %v561, %v553
        %v563 = vadd.f32 %v562, %v555
        %v564 = vsel %vm261, %v557, 0.0
        %v565 = vadd.f32 %v563, %v564
        %v566 = vrot.slane %v565, 4
        %v567 = vadd.f32 %v565, %v566
        %v568 = vrot.slane %v567, 2
        %v569 = vadd.f32 %v567, %v568
        %v570 = vrot.slane %v569, 1
        %v571 = vadd.f32 %v569, %v570
        %v572 = vadd.f32 %v546, %v548
        %v573 = vadd.f32 %v572, %v550
        %v574 = vadd.f32 %v573, %v552
        %v575 = vadd.f32 %v574, %v554
        %v576 = vadd.f32 %v575, %v556
        %v577 = vsel %vm261, %v558, 0.0
        %v578 = vadd.f32 %v576, %v577
        %v579 = vrot.slane %v578, 4
        %v580 = vadd.f32 %v578, %v579
        %v581 = vrot.slane %v580, 2
        %v582 = vadd.f32 %v580, %v581
        %v583 = vrot.slane %v582, 1
        %v584 = vadd.f32 %v582, %v583
        %v585 = vrcp.pop %v421
        %v586 = vrcp.pop %v434
        %v587 = vmul.f32 %v503, %v585
        %v588 = vmul.f32 %v516, %v586
        %v591 = vcombine.low %v587, %v588
        %v593 = vunpack.c.l.s4 1966171168
        %v594 = vunpack.c.0.s8 %v593
        %v595 = vlaneseq
        %v596 = vshrl.u32 %v595, 7
        %v597 = vsub.s32 %v594, %v596
        %v598 = vrot.slane %v591, %v597
        %v600 = vunpack.c.l.s4 1966171168
        %v601 = vunpack.c.0.s8 %v600
        %v602 = vlaneseq
        %v603 = vshrl.u32 %v602, 7
        %v604 = vsub.s32 %v601, %v603
        %v605 = vrot.slane %v598, %v604
        %v607 = vlaneseq
        %vm608 = vcmp.ge.s32.totalorder %v607, 0
        %vm609 = vcmp.lt.s32.totalorder %v607, 256
        %vm610 = vmand %vm608, %vm609
        %611 = vst.msk [vmem:[%s188] ss:$2 sm:$0x3] %vm610, %v605
        %v612 = vmul.f32 %v571, %v585
        %v613 = vmul.f32 %v584, %v586
        %v616 = vcombine.low %v612, %v613
        %v618 = vunpack.c.l.s4 1966171168
        %v619 = vunpack.c.0.s8 %v618
        %v620 = vlaneseq
        %v621 = vshrl.u32 %v620, 7
        %v622 = vsub.s32 %v619, %v621
        %v623 = vrot.slane %v616, %v622
        %v625 = vunpack.c.l.s4 1966171168
        %v626 = vunpack.c.0.s8 %v625
        %v627 = vlaneseq
        %v628 = vshrl.u32 %v627, 7
        %v629 = vsub.s32 %v626, %v628
        %v630 = vrot.slane %v623, %v629
        %s632 = scalar_lea.vmem %s188, 1 [#allocation2]
        %633 = vst.msk [vmem:[%s632] ss:$2 sm:$0x3] %vm610, %v630
        %s634 = sand.u32 %s109, 1
        %s635 = scalar_lea.sflag [#allocation3], %s634
        %s636 = sand.u32 %s109, 1
        %s637 = smul.addr %s636, 4
        %s638 = scalar_lea.vmem [#allocation2], %s637
        // Predicated region
        $region33: #{tpu_custom_call.1} parent=31 // pred_check
          %p639 = pneg %p119
        $region34: #{tpu_custom_call.1} parent=31 // pred_check_branch
          %641 = sbr.rel (%p639) target = $region36
        $region35: #{tpu_custom_call.1} parent=31 // pred_region
          %s642 = smul.u32 2, %s22
          %s644 = ssub.s32 64, 64
          %645 = vsyncadd %s635, %s644
          %s646 = smul.addr %s21, 2
          %s647 = sadd.s32 %s642, %s646
          %s648 = smul.addr %s647, 32
          %s649 = scalar_lea.hbm %s3, %s648
          %s651 = sshll.u32 %s638, 4
          %s652 = int_to_ptr.vmem [resolvable:$true] %s651
          %654 = dma.vmem_to_hbm [thread:$0]  %s652, 64, %s649, %s635
        $region36: #{tpu_custom_call.1} parent=31 // pred_fallthru
          _
      $region32: #{tpu_custom_call.1} parent=5 // pred_fallthru
        _
      %p655 = scmp.le.s32.totalorder 2, %s12
      // Predicated region
      $region37: #{tpu_custom_call.1} parent=5 // pred_check
        %p656 = pneg %p655
      $region38: #{tpu_custom_call.1} parent=5 // pred_check_branch
        %658 = sbr.rel (%p656) target = $region40
      $region39: #{tpu_custom_call.1} parent=5 // pred_region
        %s659 = ssub.s32 %s12, 2
        // Predicated region
        $region41: #{tpu_custom_call.1} parent=39 // pred_check
          %p660 = pneg %p125
        $region42: #{tpu_custom_call.1} parent=39 // pred_check_branch
          %662 = sbr.rel (%p660) target = $region44
        $region43: #{tpu_custom_call.1} parent=39 // pred_region
          %s663 = sand.u32 %s110, 1
          %s664 = scalar_lea.sflag [#allocation3], %s663
          %s665 = sand.u32 %s110, 1
          %s666 = smul.addr %s665, 4
          %s667 = scalar_lea.vmem [#allocation2], %s666
          %668 = dma.done %s664, 64
        $region44: #{tpu_custom_call.1} parent=39 // pred_fallthru
          _
      $region40: #{tpu_custom_call.1} parent=5 // pred_fallthru
        _
    $region6: #{tpu_custom_call.1} parent=1 // loop_footer
      %s16 = sadd.s32 1, %s12
    $region7: #{tpu_custom_call.1} parent=1 // loop_footer_branch
      %11 = sbr.rel target = $region3
    $region8: #{tpu_custom_call.1} parent=1 // loop_exit
      _
    %669 = vsyncpa [#allocation3], 1
    %s670 = scalar_lea.sflag [#allocation3], 1
    %671 = vsyncpa %s670, 1

</llo_original>
